<compile_context>
chip_gen: v5e
topology: v5e:2x2
jax: 0.10.0
libtpu: 0.0.40
codegen_flags: <defaults>
</compile_context>

<pallas_src>
import functools

import jax
import jax.numpy as jnp
from jax import lax
from jax.experimental import pallas as pl
from jax.experimental.pallas import tpu as pltpu


def _bottleneck_kernel(x_ref, w1_ref, b1_ref, w2_ref, b2_ref, w3_ref, b3_ref,
                       o_ref, *, l_out: int):
    """Fused Bottleneck forward for one batch element.

    x_ref : (1, C_in, L+2)   input with a 1-column zero halo on each side
    w1_ref: (width, C_in)    conv1 1x1 weight, bn1 scale folded in
    b1_ref: (width, 1)       bn1 bias
    w2_ref: (3, width, width) conv2 3x3 weight (tap-major), bn2 folded in
    b2_ref: (width, 1)       bn2 bias
    w3_ref: (C_out, width)   conv3 1x1 weight, bn3 folded in
    b3_ref: (C_out, 1)       bn3 bias
    o_ref : (1, C_out, L)
    """
    f32 = jnp.float32
    x_pad = x_ref[0]                                         # (C_in, L+2)

    # ---- conv1 (1x1) + bn1 + relu -------------------------------------
    h1 = jnp.dot(w1_ref[...], x_pad,
                 preferred_element_type=f32,
                 precision=lax.Precision.HIGHEST) + b1_ref[...]
    h1 = jnp.maximum(h1, 0.0)                                # (width, L+2)

    # conv2's implicit zero padding applies to h1 (its own input), not to x,
    # so zero the two halo columns we carried through conv1/bn1/relu.
    lane = lax.broadcasted_iota(jnp.int32, h1.shape, 1)
    h1 = jnp.where((lane == 0) | (lane == l_out + 1), 0.0, h1)

    # ---- conv2 (3x3, stride 1, pad 1) + bn2 + relu ---------------------
    acc = jnp.zeros((h1.shape[0], l_out), f32)
    for k in range(3):                                       # unrolled at trace time
        acc += jnp.dot(w2_ref[k], h1[:, k:k + l_out],
                       preferred_element_type=f32,
                       precision=lax.Precision.HIGHEST)
    h2 = jnp.maximum(acc + b2_ref[...], 0.0)                 # (width, L)

    # ---- conv3 (1x1) + bn3 + residual add + relu -----------------------
    identity = x_pad[:, 1:1 + l_out]                         # (C_in, L) == (C_out, L)
    out = jnp.dot(w3_ref[...], h2,
                  preferred_element_type=f32,
                  precision=lax.Precision.HIGHEST) + b3_ref[...] + identity
    o_ref[0] = jnp.maximum(out, 0.0).astype(o_ref.dtype)     # single full-tile store


def bottleneck_forward(x: jnp.ndarray, p: dict, *, eps: float = 1e-5) -> jnp.ndarray:
    """Pallas Bottleneck forward (stride=1, groups=1, dilation=1, downsample=None).

    p holds PyTorch-shaped parameters:
      w1 (width, C_in, 1), w2 (width, width, 3), w3 (C_out, width, 1),
      bn{1,2,3}_{gamma,beta,mean,var} per-channel vectors.
    """
    B, c_in, L = x.shape
    w1 = p["w1"][:, :, 0]                 # (width, C_in)
    w2 = p["w2"]                          # (width, width, 3)
    w3 = p["w3"][:, :, 0]                 # (C_out, width)
    width = w1.shape[0]
    c_out = w3.shape[0]
    assert c_in == c_out, "downsample=None identity add needs inplanes == planes*expansion"

    def fold(w, tag):
        scale = p[f"{tag}_gamma"] / jnp.sqrt(p[f"{tag}_var"] + eps)
        bias = p[f"{tag}_beta"] - p[f"{tag}_mean"] * scale
        shape = (-1,) + (1,) * (w.ndim - 1)
        return (w * scale.reshape(shape)).astype(jnp.float32), bias.reshape(-1, 1).astype(jnp.float32)

    w1f, b1f = fold(w1, "bn1")
    w2f, b2f = fold(w2, "bn2")
    w3f, b3f = fold(w3, "bn3")
    w2f = jnp.transpose(w2f, (2, 0, 1))   # (3, width, width), tap-major for the kernel

    # Free wrapper-side halo so the kernel never needs in-kernel padding.
    x_pad = jnp.pad(x, ((0, 0), (0, 0), (1, 1)))             # (B, C_in, L+2)

    kernel = functools.partial(_bottleneck_kernel, l_out=L)

    return pl.pallas_call(
        kernel,
        out_shape=jax.ShapeDtypeStruct((B, c_out, L), x.dtype),
        grid_spec=pltpu.PrefetchScalarGridSpec(
            num_scalar_prefetch=0,
            grid=(B,),
            in_specs=[
                pl.BlockSpec((1, c_in, L + 2), lambda b: (b, 0, 0)),
                pl.BlockSpec((width, c_in), lambda b: (0, 0)),
                pl.BlockSpec((width, 1), lambda b: (0, 0)),
                pl.BlockSpec((3, width, width), lambda b: (0, 0, 0)),
                pl.BlockSpec((width, 1), lambda b: (0, 0)),
                pl.BlockSpec((c_out, width), lambda b: (0, 0)),
                pl.BlockSpec((c_out, 1), lambda b: (0, 0)),
            ],
            out_specs=pl.BlockSpec((1, c_out, L), lambda b: (b, 0, 0)),
        ),
        compiler_params=pltpu.CompilerParams(
            dimension_semantics=("parallel",),
        ),
    )(x_pad, w1f, b1f, w2f, b2f, w3f, b3f)


def _reference(x, p, eps=1e-5):
    """Pure-JAX (XLA) reference of the Bottleneck forward, inference-mode BN."""
    def conv(y, w, stride=1, pad=0):
        return lax.conv_general_dilated(
            y, w, window_strides=(stride,), padding=[(pad, pad)],
            dimension_numbers=("NCH", "OIH", "NCH"),
            precision=lax.Precision.HIGHEST)

    def bn(y, tag):
        scale = p[f"{tag}_gamma"] / jnp.sqrt(p[f"{tag}_var"] + eps)
        bias = p[f"{tag}_beta"] - p[f"{tag}_mean"] * scale
        return y * scale[None, :, None] + bias[None, :, None]

    out = jax.nn.relu(bn(conv(x, p["w1"]), "bn1"))
    out = jax.nn.relu(bn(conv(out, p["w2"], pad=1), "bn2"))
    out = bn(conv(out, p["w3"]), "bn3")
    return jax.nn.relu(out + x)


if __name__ == "__main__":
    key = jax.random.PRNGKey(0)
    B, planes, L = 2, 4, 16
    inplanes = planes * 4           # 16: required for the downsample=None identity add
    width = planes                  # base_width=64, groups=1 -> width == planes

    keys = jax.random.split(key, 16)
    p = {
        "w1": 0.3 * jax.random.normal(keys[0], (width, inplanes, 1), jnp.float32),
        "w2": 0.3 * jax.random.normal(keys[1], (width, width, 3), jnp.float32),
        "w3": 0.3 * jax.random.normal(keys[2], (inplanes, width, 1), jnp.float32),
    }
    for i, (tag, ch) in enumerate((("bn1", width), ("bn2", width), ("bn3", inplanes))):
        p[f"{tag}_gamma"] = 1.0 + 0.1 * jax.random.normal(keys[3 + 4 * i], (ch,), jnp.float32)
        p[f"{tag}_beta"] = 0.1 * jax.random.normal(keys[4 + 4 * i], (ch,), jnp.float32)
        p[f"{tag}_mean"] = 0.1 * jax.random.normal(keys[5 + 4 * i], (ch,), jnp.float32)
        p[f"{tag}_var"] = jax.nn.softplus(
            jax.random.normal(keys[6 + 4 * i], (ch,), jnp.float32)) + 0.5

    x = jax.random.normal(keys[15], (B, inplanes, L), dtype=jnp.float32)

    out = jax.block_until_ready(bottleneck_forward(x, p))
    ref = jax.block_until_ready(_reference(x, p))

    assert out.shape == ref.shape == (B, inplanes, L), out.shape
    max_err = float(jnp.max(jnp.abs(out - ref)))
    assert jnp.allclose(out, ref, atol=1e-3, rtol=1e-3), f"mismatch, max_err={max_err}"

    print("KERNEL_OK")
</pallas_src>

<mosaic_0001>
module attributes {stable_mosaic.version = 11 : i64} {
  func.func @_bottleneck_kernel(%arg0: i32, %arg1: memref<1x16x18xf32, #tpu.memory_space<vmem>>, %arg2: memref<4x16xf32, #tpu.memory_space<vmem>>, %arg3: memref<4x1xf32, #tpu.memory_space<vmem>>, %arg4: memref<3x4x4xf32, #tpu.memory_space<vmem>>, %arg5: memref<4x1xf32, #tpu.memory_space<vmem>>, %arg6: memref<16x4xf32, #tpu.memory_space<vmem>>, %arg7: memref<16x1xf32, #tpu.memory_space<vmem>>, %arg8: memref<1x16x16xf32, #tpu.memory_space<vmem>>) attributes {dimension_semantics = [#tpu.dimension_semantics<parallel>], iteration_bounds = array<i64: 2>, scalar_prefetch = 0 : i64, scratch_operands = 0 : i64, tpu.core_type = #tpu.core_type<tc>, window_params = [{transform_indices = @transform_0, window_bounds = array<i64: 1, 16, 18>}, {pipeline_mode = #tpu.pipeline_mode<synchronous>, transform_indices = @transform_1, window_bounds = array<i64: 4, 16>}, {pipeline_mode = #tpu.pipeline_mode<synchronous>, transform_indices = @transform_2, window_bounds = array<i64: 4, 1>}, {pipeline_mode = #tpu.pipeline_mode<synchronous>, transform_indices = @transform_3, window_bounds = array<i64: 3, 4, 4>}, {pipeline_mode = #tpu.pipeline_mode<synchronous>, transform_indices = @transform_4, window_bounds = array<i64: 4, 1>}, {pipeline_mode = #tpu.pipeline_mode<synchronous>, transform_indices = @transform_5, window_bounds = array<i64: 16, 4>}, {pipeline_mode = #tpu.pipeline_mode<synchronous>, transform_indices = @transform_6, window_bounds = array<i64: 16, 1>}, {transform_indices = @transform_7, window_bounds = array<i64: 1, 16, 16>}]} {
    %c0 = arith.constant 0 : index
    %c0_0 = arith.constant 0 : index
    %c0_1 = arith.constant 0 : index
    %0 = vector.load %arg1[%c0, %c0_0, %c0_1] : memref<1x16x18xf32, #tpu.memory_space<vmem>>, vector<1x16x18xf32>
    %1 = vector.shape_cast %0 : vector<1x16x18xf32> to vector<16x18xf32>
    %c0_2 = arith.constant 0 : index
    %c0_3 = arith.constant 0 : index
    %2 = vector.load %arg2[%c0_2, %c0_3] : memref<4x16xf32, #tpu.memory_space<vmem>>, vector<4x16xf32>
    %cst = arith.constant dense<0.000000e+00> : vector<4x18xf32>
    %3 = tpu.matmul %2, %1, %cst {dimension_numbers = #tpu.dot_dimension_numbers<[1], [0], [0], [1], [0, 0, 1, 1], [], []>, precision = #tpu.contract_precision<fp32>} : vector<4x16xf32>, vector<16x18xf32>, vector<4x18xf32> -> vector<4x18xf32>
    %c0_4 = arith.constant 0 : index
    %c0_5 = arith.constant 0 : index
    %4 = vector.load %arg3[%c0_4, %c0_5] : memref<4x1xf32, #tpu.memory_space<vmem>>, vector<4x1xf32>
    %5 = vector.broadcast %4 : vector<4x1xf32> to vector<4x18xf32>
    %6 = arith.addf %3, %5 : vector<4x18xf32>
    %cst_6 = arith.constant 0.000000e+00 : f32
    %7 = vector.broadcast %cst_6 : f32 to vector<4x18xf32>
    %8 = arith.maximumf %6, %7 : vector<4x18xf32>
    %9 = tpu.iota {dimensions = array<i32: 1>} : vector<4x18xi32>
    %c0_i32 = arith.constant 0 : i32
    %10 = vector.broadcast %c0_i32 : i32 to vector<4x18xi32>
    %11 = arith.cmpi eq, %9, %10 : vector<4x18xi32>
    %c17_i32 = arith.constant 17 : i32
    %12 = vector.broadcast %c17_i32 : i32 to vector<4x18xi32>
    %13 = arith.cmpi eq, %9, %12 : vector<4x18xi32>
    %14 = arith.ori %11, %13 : vector<4x18xi1>
    %cst_7 = arith.constant 0.000000e+00 : f32
    %15 = vector.broadcast %cst_7 : f32 to vector<4x18xf32>
    %16 = arith.select %14, %15, %8 : vector<4x18xi1>, vector<4x18xf32>
    %cst_8 = arith.constant 0.000000e+00 : f32
    %17 = vector.broadcast %cst_8 : f32 to vector<4x16xf32>
    %c0_9 = arith.constant 0 : index
    %c0_10 = arith.constant 0 : index
    %c0_11 = arith.constant 0 : index
    %18 = vector.load %arg4[%c0_9, %c0_10, %c0_11] : memref<3x4x4xf32, #tpu.memory_space<vmem>>, vector<1x4x4xf32>
    %19 = vector.shape_cast %18 : vector<1x4x4xf32> to vector<4x4xf32>
    %20 = vector.extract_strided_slice %16 {offsets = [0, 0], sizes = [4, 16], strides = [1, 1]} : vector<4x18xf32> to vector<4x16xf32>
    %cst_12 = arith.constant dense<0.000000e+00> : vector<4x16xf32>
    %21 = tpu.matmul %19, %20, %cst_12 {dimension_numbers = #tpu.dot_dimension_numbers<[1], [0], [0], [1], [0, 0, 1, 1], [], []>, precision = #tpu.contract_precision<fp32>} : vector<4x4xf32>, vector<4x16xf32>, vector<4x16xf32> -> vector<4x16xf32>
    %22 = arith.addf %17, %21 : vector<4x16xf32>
    %c1 = arith.constant 1 : index
    %c0_13 = arith.constant 0 : index
    %c0_14 = arith.constant 0 : index
    %23 = vector.load %arg4[%c1, %c0_13, %c0_14] : memref<3x4x4xf32, #tpu.memory_space<vmem>>, vector<1x4x4xf32>
    %24 = vector.shape_cast %23 : vector<1x4x4xf32> to vector<4x4xf32>
    %25 = vector.extract_strided_slice %16 {offsets = [0, 1], sizes = [4, 16], strides = [1, 1]} : vector<4x18xf32> to vector<4x16xf32>
    %cst_15 = arith.constant dense<0.000000e+00> : vector<4x16xf32>
    %26 = tpu.matmul %24, %25, %cst_15 {dimension_numbers = #tpu.dot_dimension_numbers<[1], [0], [0], [1], [0, 0, 1, 1], [], []>, precision = #tpu.contract_precision<fp32>} : vector<4x4xf32>, vector<4x16xf32>, vector<4x16xf32> -> vector<4x16xf32>
    %27 = arith.addf %22, %26 : vector<4x16xf32>
    %c2 = arith.constant 2 : index
    %c0_16 = arith.constant 0 : index
    %c0_17 = arith.constant 0 : index
    %28 = vector.load %arg4[%c2, %c0_16, %c0_17] : memref<3x4x4xf32, #tpu.memory_space<vmem>>, vector<1x4x4xf32>
    %29 = vector.shape_cast %28 : vector<1x4x4xf32> to vector<4x4xf32>
    %30 = vector.extract_strided_slice %16 {offsets = [0, 2], sizes = [4, 16], strides = [1, 1]} : vector<4x18xf32> to vector<4x16xf32>
    %cst_18 = arith.constant dense<0.000000e+00> : vector<4x16xf32>
    %31 = tpu.matmul %29, %30, %cst_18 {dimension_numbers = #tpu.dot_dimension_numbers<[1], [0], [0], [1], [0, 0, 1, 1], [], []>, precision = #tpu.contract_precision<fp32>} : vector<4x4xf32>, vector<4x16xf32>, vector<4x16xf32> -> vector<4x16xf32>
    %32 = arith.addf %27, %31 : vector<4x16xf32>
    %c0_19 = arith.constant 0 : index
    %c0_20 = arith.constant 0 : index
    %33 = vector.load %arg5[%c0_19, %c0_20] : memref<4x1xf32, #tpu.memory_space<vmem>>, vector<4x1xf32>
    %34 = vector.broadcast %33 : vector<4x1xf32> to vector<4x16xf32>
    %35 = arith.addf %32, %34 : vector<4x16xf32>
    %cst_21 = arith.constant 0.000000e+00 : f32
    %36 = vector.broadcast %cst_21 : f32 to vector<4x16xf32>
    %37 = arith.maximumf %35, %36 : vector<4x16xf32>
    %38 = vector.extract_strided_slice %1 {offsets = [0, 1], sizes = [16, 16], strides = [1, 1]} : vector<16x18xf32> to vector<16x16xf32>
    %c0_22 = arith.constant 0 : index
    %c0_23 = arith.constant 0 : index
    %39 = vector.load %arg6[%c0_22, %c0_23] : memref<16x4xf32, #tpu.memory_space<vmem>>, vector<16x4xf32>
    %cst_24 = arith.constant dense<0.000000e+00> : vector<16x16xf32>
    %40 = tpu.matmul %39, %37, %cst_24 {dimension_numbers = #tpu.dot_dimension_numbers<[1], [0], [0], [1], [0, 0, 1, 1], [], []>, precision = #tpu.contract_precision<fp32>} : vector<16x4xf32>, vector<4x16xf32>, vector<16x16xf32> -> vector<16x16xf32>
    %c0_25 = arith.constant 0 : index
    %c0_26 = arith.constant 0 : index
    %41 = vector.load %arg7[%c0_25, %c0_26] : memref<16x1xf32, #tpu.memory_space<vmem>>, vector<16x1xf32>
    %42 = vector.broadcast %41 : vector<16x1xf32> to vector<16x16xf32>
    %43 = arith.addf %40, %42 : vector<16x16xf32>
    %44 = arith.addf %43, %38 : vector<16x16xf32>
    %cst_27 = arith.constant 0.000000e+00 : f32
    %45 = vector.broadcast %cst_27 : f32 to vector<16x16xf32>
    %46 = arith.maximumf %44, %45 : vector<16x16xf32>
    %c0_28 = arith.constant 0 : index
    %c0_29 = arith.constant 0 : index
    %c0_30 = arith.constant 0 : index
    %47 = vector.load %arg8[%c0_28, %c0_29, %c0_30] : memref<1x16x16xf32, #tpu.memory_space<vmem>>, vector<1x16x16xf32>
    %48 = vector.shape_cast %47 : vector<1x16x16xf32> to vector<16x16xf32>
    %49 = vector.shape_cast %46 : vector<16x16xf32> to vector<1x16x16xf32>
    tpu.vector_store %arg8[%c0_28, %c0_29, %c0_30], %49 {strides = array<i32>} : memref<1x16x16xf32, #tpu.memory_space<vmem>>, vector<1x16x16xf32>,
    return
  }
  func.func @transform_0(%arg0: i32) -> (i32, i32, i32) {
    %c0_i32 = arith.constant 0 : i32
    %c0_i32_0 = arith.constant 0 : i32
    %c0_i32_1 = arith.constant 0 : i32
    return %arg0, %c0_i32, %c0_i32_0 : i32, i32, i32
  }
  func.func @transform_1(%arg0: i32) -> (i32, i32) {
    %c0_i32 = arith.constant 0 : i32
    %c0_i32_0 = arith.constant 0 : i32
    %c0_i32_1 = arith.constant 0 : i32
    return %c0_i32, %c0_i32_0 : i32, i32
  }
  func.func @transform_2(%arg0: i32) -> (i32, i32) {
    %c0_i32 = arith.constant 0 : i32
    %c0_i32_0 = arith.constant 0 : i32
    %c0_i32_1 = arith.constant 0 : i32
    return %c0_i32, %c0_i32_0 : i32, i32
  }
  func.func @transform_3(%arg0: i32) -> (i32, i32, i32) {
    %c0_i32 = arith.constant 0 : i32
    %c0_i32_0 = arith.constant 0 : i32
    %c0_i32_1 = arith.constant 0 : i32
    %c0_i32_2 = arith.constant 0 : i32
    return %c0_i32, %c0_i32_0, %c0_i32_1 : i32, i32, i32
  }
  func.func @transform_4(%arg0: i32) -> (i32, i32) {
    %c0_i32 = arith.constant 0 : i32
    %c0_i32_0 = arith.constant 0 : i32
    %c0_i32_1 = arith.constant 0 : i32
    return %c0_i32, %c0_i32_0 : i32, i32
  }
  func.func @transform_5(%arg0: i32) -> (i32, i32) {
    %c0_i32 = arith.constant 0 : i32
    %c0_i32_0 = arith.constant 0 : i32
    %c0_i32_1 = arith.constant 0 : i32
    return %c0_i32, %c0_i32_0 : i32, i32
  }
  func.func @transform_6(%arg0: i32) -> (i32, i32) {
    %c0_i32 = arith.constant 0 : i32
    %c0_i32_0 = arith.constant 0 : i32
    %c0_i32_1 = arith.constant 0 : i32
    return %c0_i32, %c0_i32_0 : i32, i32
  }
  func.func @transform_7(%arg0: i32) -> (i32, i32, i32) {
    %c0_i32 = arith.constant 0 : i32
    %c0_i32_0 = arith.constant 0 : i32
    %c0_i32_1 = arith.constant 0 : i32
    return %arg0, %c0_i32, %c0_i32_0 : i32, i32, i32
  }
}

</mosaic_0001>

<llo_original>
// kernel: tpu_custom_call.1
$region0: #{tpu_custom_call.1}
  #allocation0 [shape = 'u32[]', space=smem, size = 0x4, offset = 0x4, fixed_abs, tag = 'smem constant byte address 0x4 - core index']
  #allocation1 [shape = 'u32[72,128]{1,0:T(1,128)}', space=vmem, size = 0x9000, scoped, tag = 'internal scratch']
  %s0 = inlined_call_operand.vmem [shape: f32[2,16,18], index: 0, kind: input, shape index: {}]
  %s1 = inlined_call_operand.vmem [shape: f32[4,16], index: 1, kind: input, shape index: {}]
  %s2 = inlined_call_operand.vmem [shape: f32[4,1], index: 2, kind: input, shape index: {}]
  %s3 = inlined_call_operand.hbm [shape: f32[3,4,4], index: 3, kind: input, shape index: {}]
  %s4 = inlined_call_operand.vmem [shape: f32[4,1], index: 4, kind: input, shape index: {}]
  %s5 = inlined_call_operand.vmem [shape: f32[16,4], index: 5, kind: input, shape index: {}]
  %s6 = inlined_call_operand.vmem [shape: f32[16,1], index: 6, kind: input, shape index: {}]
  %s7 = inlined_call_operand.hbm [shape: f32[2,16,16], index: 7, kind: output, shape index: {}]
  %s8 = sld [smem:[#allocation0]]
  $region65: #{tpu_custom_call.1} parent=0
    _
  %s10 = ssub.s32 1, %s8
  %s11 = scalar_select 0, %s10, %s8
  $region1: #{tpu_custom_call.1} parent=0
    #allocation2 [shape = 'u8[6144]{0}', space=vmem, size = 0x1800, scoped, tag = 'input window, operand 3, single buffered']
    #allocation3 [shape = 's32[2]{0}', space=sflag, size = 0x8, scoped, tag = 'scoped memory for tpu_custom_call.1']
    #allocation4 [shape = 's32[2]{0}', space=sflag, size = 0x8, scoped, tag = 'scoped memory for tpu_custom_call.1']
    #allocation5 [shape = 'u8[16384]{0}', space=vmem, size = 0x4000, scoped, tag = 'output window, operand 0']
    %12 = vsyncpa [#allocation3], 0
    %13 = vsyncpa [#allocation4], 0
    %s14 = scalar_lea.sflag [#allocation4], 1
    %15 = vsyncpa %s14, 0
    loop: start=0, step=1, limit=4
    $region2: #{tpu_custom_call.1} parent=1 // loop_pre_header
      _
    $region3: #{tpu_custom_call.1} parent=1 // loop_header
      %s17 = sphi 0, %s21
      %p18 = scmp.ge.s32.totalorder %s17, 4
      %s27 = sphi 0, %s29
      %s30 = sphi 0, %s27
      %s31 = sphi 0, %s30
      %s47 = sphi 0, %s31
      %s51 = sphi 0, %s51
      %s53 = sphi 0, %s51
      %s54 = sphi 0, %s53
      %s68 = sphi 0, %s54
      %s72 = sphi 0, %s72
      %s74 = sphi 0, %s72
      %s75 = sphi 0, %s74
      %s89 = sphi 0, %s75
      %s93 = sphi 0, %s93
      %s95 = sphi 0, %s93
      %s96 = sphi 0, %s95
      %s110 = sphi 0, %s96
      %s114 = sphi 0, %s114
      %s116 = sphi 0, %s114
      %s117 = sphi 0, %s116
      %s131 = sphi 0, %s117
      %s135 = sphi 0, %s135
      %s137 = sphi 0, %s135
      %s138 = sphi 0, %s137
      %s152 = sphi 0, %s138
      %s156 = sphi 0, %s156
      %s158 = sphi 0, %s156
      %s159 = sphi 0, %s158
      %s173 = sphi 0, %s159
      %s179 = sphi 0, %s181
      %s182 = sphi 0, %s179
      %s183 = sphi 0, %s182
      %s199 = sphi 0, %s183
    $region4: #{tpu_custom_call.1} parent=1 // loop_header_branch
      %20 = sbr.rel (%p18) target = $region8
    $region5: #{tpu_custom_call.1} parent=1 // loop_body
      %s22 = ssub.s32 %s17, 1
      %s23 = ssub.s32 %s17, 2
      %s24 = sadd.s32 %s17, 1
      %s25 = ssub.s32 %s17, %s24
      %p26 = scmp.eq.s32.totalorder %s25, 0
      %s28 = sadd.s32 %s27, 1
      %s29 = scalar_select %p26, %s27, %s28
      %p32 = pneg %p26
      %p33 = scmp.eq.s32.totalorder %s17, 1
      %p34 = por %p32, %p33
      %p35 = scmp.ne.s32.totalorder %s27, %s30
      %p36 = scmp.eq.s32.totalorder %s17, 0
      %p37 = por %p35, %p36
      %p38 = scmp.ne.s32.totalorder %s27, %s30
      %p39 = scmp.eq.s32.totalorder %s22, 1
      %p40 = por %p38, %p39
      %p41 = scmp.ne.s32.totalorder %s30, %s31
      %p42 = scmp.eq.s32.totalorder %s22, 0
      %p43 = por %p41, %p42
      %p44 = scmp.ne.s32.totalorder %s30, %s31
      %p45 = scmp.eq.s32.totalorder %s23, 1
      %p46 = por %p44, %p45
      %p48 = scmp.ne.s32.totalorder %s31, %s47
      %p49 = scmp.eq.s32.totalorder %s23, 0
      %p50 = por %p48, %p49
      %s52 = sadd.s32 %s51, 1
      %p55 = scmp.eq.s32.totalorder %s17, 1
      %p56 = scmp.ne.s32.totalorder %s51, %s53
      %p57 = scmp.eq.s32.totalorder %s17, 0
      %p58 = por %p56, %p57
      %p59 = scmp.ne.s32.totalorder %s51, %s53
      %p60 = scmp.eq.s32.totalorder %s22, 1
      %p61 = por %p59, %p60
      %p62 = scmp.ne.s32.totalorder %s53, %s54
      %p63 = scmp.eq.s32.totalorder %s22, 0
      %p64 = por %p62, %p63
      %p65 = scmp.ne.s32.totalorder %s53, %s54
      %p66 = scmp.eq.s32.totalorder %s23, 1
      %p67 = por %p65, %p66
      %p69 = scmp.ne.s32.totalorder %s54, %s68
      %p70 = scmp.eq.s32.totalorder %s23, 0
      %p71 = por %p69, %p70
      %s73 = sadd.s32 %s72, 1
      %p76 = scmp.eq.s32.totalorder %s17, 1
      %p77 = scmp.ne.s32.totalorder %s72, %s74
      %p78 = scmp.eq.s32.totalorder %s17, 0
      %p79 = por %p77, %p78
      %p80 = scmp.ne.s32.totalorder %s72, %s74
      %p81 = scmp.eq.s32.totalorder %s22, 1
      %p82 = por %p80, %p81
      %p83 = scmp.ne.s32.totalorder %s74, %s75
      %p84 = scmp.eq.s32.totalorder %s22, 0
      %p85 = por %p83, %p84
      %p86 = scmp.ne.s32.totalorder %s74, %s75
      %p87 = scmp.eq.s32.totalorder %s23, 1
      %p88 = por %p86, %p87
      %p90 = scmp.ne.s32.totalorder %s75, %s89
      %p91 = scmp.eq.s32.totalorder %s23, 0
      %p92 = por %p90, %p91
      %s94 = sadd.s32 %s93, 1
      %p97 = scmp.eq.s32.totalorder %s17, 1
      %p98 = scmp.ne.s32.totalorder %s93, %s95
      %p99 = scmp.eq.s32.totalorder %s17, 0
      %p100 = por %p98, %p99
      %p101 = scmp.ne.s32.totalorder %s93, %s95
      %p102 = scmp.eq.s32.totalorder %s22, 1
      %p103 = por %p101, %p102
      %p104 = scmp.ne.s32.totalorder %s95, %s96
      %p105 = scmp.eq.s32.totalorder %s22, 0
      %p106 = por %p104, %p105
      %p107 = scmp.ne.s32.totalorder %s95, %s96
      %p108 = scmp.eq.s32.totalorder %s23, 1
      %p109 = por %p107, %p108
      %p111 = scmp.ne.s32.totalorder %s96, %s110
      %p112 = scmp.eq.s32.totalorder %s23, 0
      %p113 = por %p111, %p112
      %s115 = sadd.s32 %s114, 1
      %p118 = scmp.eq.s32.totalorder %s17, 1
      %p119 = scmp.ne.s32.totalorder %s114, %s116
      %p120 = scmp.eq.s32.totalorder %s17, 0
      %p121 = por %p119, %p120
      %p122 = scmp.ne.s32.totalorder %s114, %s116
      %p123 = scmp.eq.s32.totalorder %s22, 1
      %p124 = por %p122, %p123
      %p125 = scmp.ne.s32.totalorder %s116, %s117
      %p126 = scmp.eq.s32.totalorder %s22, 0
      %p127 = por %p125, %p126
      %p128 = scmp.ne.s32.totalorder %s116, %s117
      %p129 = scmp.eq.s32.totalorder %s23, 1
      %p130 = por %p128, %p129
      %p132 = scmp.ne.s32.totalorder %s117, %s131
      %p133 = scmp.eq.s32.totalorder %s23, 0
      %p134 = por %p132, %p133
      %s136 = sadd.s32 %s135, 1
      %p139 = scmp.eq.s32.totalorder %s17, 1
      %p140 = scmp.ne.s32.totalorder %s135, %s137
      %p141 = scmp.eq.s32.totalorder %s17, 0
      %p142 = por %p140, %p141
      %p143 = scmp.ne.s32.totalorder %s135, %s137
      %p144 = scmp.eq.s32.totalorder %s22, 1
      %p145 = por %p143, %p144
      %p146 = scmp.ne.s32.totalorder %s137, %s138
      %p147 = scmp.eq.s32.totalorder %s22, 0
      %p148 = por %p146, %p147
      %p149 = scmp.ne.s32.totalorder %s137, %s138
      %p150 = scmp.eq.s32.totalorder %s23, 1
      %p151 = por %p149, %p150
      %p153 = scmp.ne.s32.totalorder %s138, %s152
      %p154 = scmp.eq.s32.totalorder %s23, 0
      %p155 = por %p153, %p154
      %s157 = sadd.s32 %s156, 1
      %p160 = scmp.eq.s32.totalorder %s17, 1
      %p161 = scmp.ne.s32.totalorder %s156, %s158
      %p162 = scmp.eq.s32.totalorder %s17, 0
      %p163 = por %p161, %p162
      %p164 = scmp.ne.s32.totalorder %s156, %s158
      %p165 = scmp.eq.s32.totalorder %s22, 1
      %p166 = por %p164, %p165
      %p167 = scmp.ne.s32.totalorder %s158, %s159
      %p168 = scmp.eq.s32.totalorder %s22, 0
      %p169 = por %p167, %p168
      %p170 = scmp.ne.s32.totalorder %s158, %s159
      %p171 = scmp.eq.s32.totalorder %s23, 1
      %p172 = por %p170, %p171
      %p174 = scmp.ne.s32.totalorder %s159, %s173
      %p175 = scmp.eq.s32.totalorder %s23, 0
      %p176 = por %p174, %p175
      %s177 = ssub.s32 %s17, %s24
      %p178 = scmp.eq.s32.totalorder %s177, 0
      %s180 = sadd.s32 %s179, 1
      %s181 = scalar_select %p178, %s179, %s180
      %p184 = pneg %p178
      %p185 = scmp.eq.s32.totalorder %s17, 1
      %p186 = por %p184, %p185
      %p187 = scmp.ne.s32.totalorder %s179, %s182
      %p188 = scmp.eq.s32.totalorder %s17, 0
      %p189 = por %p187, %p188
      %p190 = scmp.ne.s32.totalorder %s179, %s182
      %p191 = scmp.eq.s32.totalorder %s22, 1
      %p192 = por %p190, %p191
      %p193 = scmp.ne.s32.totalorder %s182, %s183
      %p194 = scmp.eq.s32.totalorder %s22, 0
      %p195 = por %p193, %p194
      %p196 = scmp.ne.s32.totalorder %s182, %s183
      %p197 = scmp.eq.s32.totalorder %s23, 1
      %p198 = por %p196, %p197
      %p200 = scmp.ne.s32.totalorder %s183, %s199
      %p201 = scmp.eq.s32.totalorder %s23, 0
      %p202 = por %p200, %p201
      %p203 = scmp.le.s32.totalorder 1, %s17
      %p204 = scmp.lt.s32.totalorder %s17, 3
      %p205 = pnand %p203, %p204
      %p206 = pneg %p205
      // Predicated region
      $region9: #{tpu_custom_call.1} parent=5 // pred_check
        _
      $region10: #{tpu_custom_call.1} parent=5 // pred_check_branch
        %208 = sbr.rel (%p205) target = $region12
      $region11: #{tpu_custom_call.1} parent=5 // pred_region
        %s209 = ssub.s32 %s17, 1
        // Predicated region
        $region13: #{tpu_custom_call.1} parent=11 // pred_check
          %p210 = pneg %p64
        $region14: #{tpu_custom_call.1} parent=11 // pred_check_branch
          %212 = sbr.rel (%p210) target = $region16
        $region15: #{tpu_custom_call.1} parent=11 // pred_region
          _
        $region16: #{tpu_custom_call.1} parent=11 // pred_fallthru
          _
        // Predicated region
        $region17: #{tpu_custom_call.1} parent=11 // pred_check
          %p213 = pneg %p85
        $region18: #{tpu_custom_call.1} parent=11 // pred_check_branch
          %215 = sbr.rel (%p213) target = $region20
        $region19: #{tpu_custom_call.1} parent=11 // pred_region
          _
        $region20: #{tpu_custom_call.1} parent=11 // pred_fallthru
          _
        // Predicated region
        $region21: #{tpu_custom_call.1} parent=11 // pred_check
          %p216 = pneg %p106
        $region22: #{tpu_custom_call.1} parent=11 // pred_check_branch
          %218 = sbr.rel (%p216) target = $region24
        $region23: #{tpu_custom_call.1} parent=11 // pred_region
          %220 = vsyncadd [#allocation3], 0
          %s221 = sshll.u32 %s3, 4
          %s222 = int_to_ptr.hbm [resolvable:$true] %s221
          %s223 = sshll.u32 [#allocation2], 4
          %s224 = int_to_ptr.vmem [resolvable:$true] %s223
          %229 = dma.hbm_to_vmem [thread:$0]  %s222, 192, %s224, [#allocation3], 64, 64, 4
        $region24: #{tpu_custom_call.1} parent=11 // pred_fallthru
          _
        // Predicated region
        $region25: #{tpu_custom_call.1} parent=11 // pred_check
          %p230 = pneg %p127
        $region26: #{tpu_custom_call.1} parent=11 // pred_check_branch
          %232 = sbr.rel (%p230) target = $region28
        $region27: #{tpu_custom_call.1} parent=11 // pred_region
          _
        $region28: #{tpu_custom_call.1} parent=11 // pred_fallthru
          _
        // Predicated region
        $region29: #{tpu_custom_call.1} parent=11 // pred_check
          %p233 = pneg %p148
        $region30: #{tpu_custom_call.1} parent=11 // pred_check_branch
          %235 = sbr.rel (%p233) target = $region32
        $region31: #{tpu_custom_call.1} parent=11 // pred_region
          _
        $region32: #{tpu_custom_call.1} parent=11 // pred_fallthru
          _
        // Predicated region
        $region33: #{tpu_custom_call.1} parent=11 // pred_check
          %p236 = pneg %p169
        $region34: #{tpu_custom_call.1} parent=11 // pred_check_branch
          %238 = sbr.rel (%p236) target = $region36
        $region35: #{tpu_custom_call.1} parent=11 // pred_region
          _
        $region36: #{tpu_custom_call.1} parent=11 // pred_fallthru
          _
      $region12: #{tpu_custom_call.1} parent=5 // pred_fallthru
        _
      %p239 = scmp.lt.s32.totalorder %s17, 2
      // Predicated region
      $region37: #{tpu_custom_call.1} parent=5 // pred_check
        %p240 = pneg %p239
      $region38: #{tpu_custom_call.1} parent=5 // pred_check_branch
        %242 = sbr.rel (%p240) target = $region40
      $region39: #{tpu_custom_call.1} parent=5 // pred_region
        // Predicated region
        $region41: #{tpu_custom_call.1} parent=39 // pred_check
          %p243 = pneg %p37
        $region42: #{tpu_custom_call.1} parent=39 // pred_check_branch
          %245 = sbr.rel (%p243) target = $region44
        $region43: #{tpu_custom_call.1} parent=39 // pred_region
          %p246 = scmp.lt.s32.totalorder %s17, 1
          %s247 = scalar_select %p246, %s17, 1
          %s248 = smul.addr %s247, 2
          %s249 = smul.addr %s248, 8
          %s250 = scalar_lea.vmem %s0, %s249
        $region44: #{tpu_custom_call.1} parent=39 // pred_fallthru
          _
      $region40: #{tpu_custom_call.1} parent=5 // pred_fallthru
        _
      %p251 = scmp.le.s32.totalorder 1, %s17
      %p252 = scmp.lt.s32.totalorder %s17, 3
      %p253 = pnand %p251, %p252
      %p254 = pneg %p253
      // Predicated region
      $region45: #{tpu_custom_call.1} parent=5 // pred_check
        _
      $region46: #{tpu_custom_call.1} parent=5 // pred_check_branch
        %256 = sbr.rel (%p253) target = $region48
      $region47: #{tpu_custom_call.1} parent=5 // pred_region
        %s257 = ssub.s32 %s17, 1
        // Predicated region
        $region49: #{tpu_custom_call.1} parent=47 // pred_check
          %p258 = pneg %p106
        $region50: #{tpu_custom_call.1} parent=47 // pred_check_branch
          %260 = sbr.rel (%p258) target = $region52
        $region51: #{tpu_custom_call.1} parent=47 // pred_region
          %262 = dma.done [#allocation3], 192
        $region52: #{tpu_custom_call.1} parent=47 // pred_fallthru
          _
        %p263 = scmp.lt.s32.totalorder %s22, 1
        %s264 = scalar_select %p263, %s22, 1
        %s265 = smul.addr %s264, 2
        %s266 = smul.addr %s265, 8
        %s267 = scalar_lea.vmem %s0, %s266
        %p268 = pneg %p43
        %p269 = pneg %p40
        %p270 = pneg %p64
        %p271 = pneg %p61
        %p272 = pneg %p85
        %p273 = pneg %p82
        %p274 = pneg %p106
        %p275 = pneg %p103
        %p276 = pneg %p127
        %p277 = pneg %p124
        %p278 = pneg %p148
        %p279 = pneg %p145
        %p280 = pneg %p169
        %p281 = pneg %p166
        %p282 = pneg %p195
        %p283 = pneg %p192
        %s284 = sand.u32 %s182, 1
        %s285 = scalar_lea.sflag [#allocation4], %s284
        %s286 = sand.u32 %s182, 1
        %s287 = smul.addr %s286, 16
        %s288 = scalar_lea.vmem [#allocation5], %s287
        %p289 = scmp.lt.s32.totalorder %s22, 1
        %s290 = scalar_select %p289, %s22, 1
        %s291 = smul.addr %s290, 2
        %s292 = smul.addr %s291, 8
        %s293 = scalar_lea.vmem %s0, %s292
        %v294 = vld [vmem:[%s293] sm:$0xff]
        %v295 = vld [vmem:[%s293 + $0x8] sm:$0xff]
        %v296 = vld [vmem:[%s1] sm:$0xf]
        %v297 = vld [vmem:[%s2] sm:$0xf]
        %299 = vset.pattern.permute.xlu0 0
        %300 = vperm.xlu0 %299, %v297
        %v301 = vpop.permute.xlu0 %300
        %vm303 = vcmask 130048
        %v305 = vsel %vm303, %v296, 0
        %307 = vmatpush.msra.mxu0 0.0
        %308 = vmatpush.msra.mxu0 0.0
        %309 = vmatpush.msra.mxu0 0.0
        %310 = vmatpush.msra.mxu0 0.0
        %311 = vmatpush.msra.mxu0 0.0
        %312 = vmatpush.msra.mxu0 0.0
        %313 = vmatpush.msra.mxu0 0.0
        %314 = vmatpush.msra.mxu0 0.0
        %315 = vmatpush.msra.mxu0 0.0
        %316 = vmatpush.msra.mxu0 0.0
        %317 = vmatpush.msra.mxu0 0.0
        %318 = vmatpush.msra.mxu0 0.0
        %319 = vmatpush.msra.mxu0 0.0
        %320 = vmatpush.msra.mxu0 0.0
        %v321 = vand.u32 %v295, 4294901760
        %322 = vmatpush.msra.mxu0 %v321
        %v323 = vand.u32 %v294, 4294901760
        %324 = vmatpush.msra.mxu0 %v323
        %v325 = vand.u32 %v305, 4294901760
        %v326 = vsub.f32 %v305, %v325
        %v327 = vand.u32 %v326, 4294901760
        %v328 = vsub.f32 %v326, %v327
        %v329 = vand.u32 %v328, 4294901760
        %330 = vmatmul.f32.gmra.mxu0 %v329
        %v331 = vpop.f32.mrf.mxu0
        %v332 = vadd.f32 %v301, %v331
        %333 = vdwg.mxu0
        %334 = vmatpush.msra.mxu0 0.0
        %335 = vmatpush.msra.mxu0 0.0
        %336 = vmatpush.msra.mxu0 0.0
        %337 = vmatpush.msra.mxu0 0.0
        %338 = vmatpush.msra.mxu0 0.0
        %339 = vmatpush.msra.mxu0 0.0
        %340 = vmatpush.msra.mxu0 0.0
        %341 = vmatpush.msra.mxu0 0.0
        %342 = vmatpush.msra.mxu0 0.0
        %343 = vmatpush.msra.mxu0 0.0
        %344 = vmatpush.msra.mxu0 0.0
        %345 = vmatpush.msra.mxu0 0.0
        %346 = vmatpush.msra.mxu0 0.0
        %347 = vmatpush.msra.mxu0 0.0
        %v348 = vand.u32 %v295, 4294901760
        %v349 = vsub.f32 %v295, %v348
        %v350 = vand.u32 %v349, 4294901760
        %v351 = vsub.f32 %v349, %v350
        %v352 = vand.u32 %v351, 4294901760
        %353 = vmatpush.msra.mxu0 %v352
        %v354 = vand.u32 %v294, 4294901760
        %v355 = vsub.f32 %v294, %v354
        %v356 = vand.u32 %v355, 4294901760
        %v357 = vsub.f32 %v355, %v356
        %v358 = vand.u32 %v357, 4294901760
        %359 = vmatpush.msra.mxu0 %v358
        %v360 = vand.u32 %v305, 4294901760
        %361 = vmatmul.f32.gmra.mxu0 %v360
        %v362 = vpop.f32.mrf.mxu0
        %v363 = vadd.f32 %v332, %v362
        %364 = vdwg.mxu0
        %365 = vmatpush.msra.mxu0 0.0
        %366 = vmatpush.msra.mxu0 0.0
        %367 = vmatpush.msra.mxu0 0.0
        %368 = vmatpush.msra.mxu0 0.0
        %369 = vmatpush.msra.mxu0 0.0
        %370 = vmatpush.msra.mxu0 0.0
        %371 = vmatpush.msra.mxu0 0.0
        %372 = vmatpush.msra.mxu0 0.0
        %373 = vmatpush.msra.mxu0 0.0
        %374 = vmatpush.msra.mxu0 0.0
        %375 = vmatpush.msra.mxu0 0.0
        %376 = vmatpush.msra.mxu0 0.0
        %377 = vmatpush.msra.mxu0 0.0
        %378 = vmatpush.msra.mxu0 0.0
        %v379 = vand.u32 %v295, 4294901760
        %v380 = vsub.f32 %v295, %v379
        %381 = vmatpush.msra.mxu0 %v380
        %v382 = vand.u32 %v294, 4294901760
        %v383 = vsub.f32 %v294, %v382
        %384 = vmatpush.msra.mxu0 %v383
        %v385 = vand.u32 %v305, 4294901760
        %v386 = vsub.f32 %v305, %v385
        %387 = vmatmul.f32.gmra.mxu0 %v386
        %v388 = vpop.f32.mrf.mxu0
        %v389 = vadd.f32 %v363, %v388
        %390 = vdwg.mxu0
        %391 = vmatpush.msra.mxu0 0.0
        %392 = vmatpush.msra.mxu0 0.0
        %393 = vmatpush.msra.mxu0 0.0
        %394 = vmatpush.msra.mxu0 0.0
        %395 = vmatpush.msra.mxu0 0.0
        %396 = vmatpush.msra.mxu0 0.0
        %397 = vmatpush.msra.mxu0 0.0
        %398 = vmatpush.msra.mxu0 0.0
        %399 = vmatpush.msra.mxu0 0.0
        %400 = vmatpush.msra.mxu0 0.0
        %401 = vmatpush.msra.mxu0 0.0
        %402 = vmatpush.msra.mxu0 0.0
        %403 = vmatpush.msra.mxu0 0.0
        %404 = vmatpush.msra.mxu0 0.0
        %v405 = vand.u32 %v295, 4294901760
        %406 = vmatpush.msra.mxu0 %v405
        %v407 = vand.u32 %v294, 4294901760
        %408 = vmatpush.msra.mxu0 %v407
        %v409 = vand.u32 %v305, 4294901760
        %v410 = vsub.f32 %v305, %v409
        %v411 = vand.u32 %v410, 4294901760
        %412 = vmatmul.f32.gmra.mxu0 %v411
        %v413 = vpop.f32.mrf.mxu0
        %v414 = vadd.f32 %v389, %v413
        %415 = vdwg.mxu0
        %416 = vmatpush.msra.mxu0 0.0
        %417 = vmatpush.msra.mxu0 0.0
        %418 = vmatpush.msra.mxu0 0.0
        %419 = vmatpush.msra.mxu0 0.0
        %420 = vmatpush.msra.mxu0 0.0
        %421 = vmatpush.msra.mxu0 0.0
        %422 = vmatpush.msra.mxu0 0.0
        %423 = vmatpush.msra.mxu0 0.0
        %424 = vmatpush.msra.mxu0 0.0
        %425 = vmatpush.msra.mxu0 0.0
        %426 = vmatpush.msra.mxu0 0.0
        %427 = vmatpush.msra.mxu0 0.0
        %428 = vmatpush.msra.mxu0 0.0
        %429 = vmatpush.msra.mxu0 0.0
        %v430 = vand.u32 %v295, 4294901760
        %v431 = vsub.f32 %v295, %v430
        %v432 = vand.u32 %v431, 4294901760
        %433 = vmatpush.msra.mxu0 %v432
        %v434 = vand.u32 %v294, 4294901760
        %v435 = vsub.f32 %v294, %v434
        %v436 = vand.u32 %v435, 4294901760
        %437 = vmatpush.msra.mxu0 %v436
        %v438 = vand.u32 %v305, 4294901760
        %439 = vmatmul.f32.gmra.mxu0 %v438
        %v440 = vpop.f32.mrf.mxu0
        %v441 = vadd.f32 %v414, %v440
        %442 = vdwg.mxu0
        %443 = vmatpush.msra.mxu0 0.0
        %444 = vmatpush.msra.mxu0 0.0
        %445 = vmatpush.msra.mxu0 0.0
        %446 = vmatpush.msra.mxu0 0.0
        %447 = vmatpush.msra.mxu0 0.0
        %448 = vmatpush.msra.mxu0 0.0
        %449 = vmatpush.msra.mxu0 0.0
        %450 = vmatpush.msra.mxu0 0.0
        %451 = vmatpush.msra.mxu0 0.0
        %452 = vmatpush.msra.mxu0 0.0
        %453 = vmatpush.msra.mxu0 0.0
        %454 = vmatpush.msra.mxu0 0.0
        %455 = vmatpush.msra.mxu0 0.0
        %456 = vmatpush.msra.mxu0 0.0
        %v457 = vand.u32 %v295, 4294901760
        %458 = vmatpush.msra.mxu0 %v457
        %v459 = vand.u32 %v294, 4294901760
        %460 = vmatpush.msra.mxu0 %v459
        %v461 = vand.u32 %v305, 4294901760
        %462 = vmatmul.f32.gmra.mxu0 %v461
        %v463 = vpop.f32.mrf.mxu0
        %v464 = vadd.f32 %v441, %v463
        %465 = vdwg.mxu0
        %v466 = vmax.f32 %v464, 0.0
        %v467 = vlaneseq
        %v468 = vand.u32 %v467, 127
        %vm469 = vcmp.eq.s32.totalorder %v468, 0
        %vm470 = vcmp.eq.s32.totalorder %v468, 17
        %vm471 = vmor %vm469, %vm470
        %v472 = vsel %vm471, 0.0, %v466
        %v473 = vld [vmem:[#allocation2] sm:$0xf]
        %s474 = scalar_lea.vmem [#allocation2], 4
        %v475 = vld [vmem:[%s474] sm:$0xf]
        %477 = vrot.lane.b32.xlu0 %v472, 127
        %v478 = vpop.permute.xlu0 %477
        %vm479 = vcmask 31744
        %v481 = vsel %vm479, %v475, 0
        %vm483 = vcmask 1043456
        %v484 = vsel %vm483, %v478, 0
        %486 = vmatpush.msra.mxu0 0.0
        %487 = vmatpush.msra.mxu0 0.0
        %488 = vmatpush.msra.mxu0 0.0
        %489 = vmatpush.msra.mxu0 0.0
        %490 = vmatpush.msra.mxu0 0.0
        %491 = vmatpush.msra.mxu0 0.0
        %492 = vmatpush.msra.mxu0 0.0
        %493 = vmatpush.msra.mxu0 0.0
        %494 = vmatpush.msra.mxu0 0.0
        %495 = vmatpush.msra.mxu0 0.0
        %496 = vmatpush.msra.mxu0 0.0
        %497 = vmatpush.msra.mxu0 0.0
        %498 = vmatpush.msra.mxu0 0.0
        %499 = vmatpush.msra.mxu0 0.0
        %500 = vmatpush.msra.mxu0 0.0
        %v501 = vand.u32 %v484, 4294901760
        %502 = vmatpush.msra.mxu0 %v501
        %v503 = vand.u32 %v481, 4294901760
        %v504 = vsub.f32 %v481, %v503
        %v505 = vand.u32 %v504, 4294901760
        %v506 = vsub.f32 %v504, %v505
        %v507 = vand.u32 %v506, 4294901760
        %508 = vmatmul.f32.gmra.mxu0 %v507
        %v509 = vpop.f32.mrf.mxu0
        %v510 = vadd.f32 0.0, %v509
        %511 = vdwg.mxu0
        %512 = vmatpush.msra.mxu0 0.0
        %513 = vmatpush.msra.mxu0 0.0
        %514 = vmatpush.msra.mxu0 0.0
        %515 = vmatpush.msra.mxu0 0.0
        %516 = vmatpush.msra.mxu0 0.0
        %517 = vmatpush.msra.mxu0 0.0
        %518 = vmatpush.msra.mxu0 0.0
        %519 = vmatpush.msra.mxu0 0.0
        %520 = vmatpush.msra.mxu0 0.0
        %521 = vmatpush.msra.mxu0 0.0
        %522 = vmatpush.msra.mxu0 0.0
        %523 = vmatpush.msra.mxu0 0.0
        %524 = vmatpush.msra.mxu0 0.0
        %525 = vmatpush.msra.mxu0 0.0
        %526 = vmatpush.msra.mxu0 0.0
        %v527 = vand.u32 %v484, 4294901760
        %v528 = vsub.f32 %v484, %v527
        %v529 = vand.u32 %v528, 4294901760
        %v530 = vsub.f32 %v528, %v529
        %v531 = vand.u32 %v530, 4294901760
        %532 = vmatpush.msra.mxu0 %v531
        %v533 = vand.u32 %v481, 4294901760
        %534 = vmatmul.f32.gmra.mxu0 %v533
        %v535 = vpop.f32.mrf.mxu0
        %v536 = vadd.f32 %v510, %v535
        %537 = vdwg.mxu0
        %538 = vmatpush.msra.mxu0 0.0
        %539 = vmatpush.msra.mxu0 0.0
        %540 = vmatpush.msra.mxu0 0.0
        %541 = vmatpush.msra.mxu0 0.0
        %542 = vmatpush.msra.mxu0 0.0
        %543 = vmatpush.msra.mxu0 0.0
        %544 = vmatpush.msra.mxu0 0.0
        %545 = vmatpush.msra.mxu0 0.0
        %546 = vmatpush.msra.mxu0 0.0
        %547 = vmatpush.msra.mxu0 0.0
        %548 = vmatpush.msra.mxu0 0.0
        %549 = vmatpush.msra.mxu0 0.0
        %550 = vmatpush.msra.mxu0 0.0
        %551 = vmatpush.msra.mxu0 0.0
        %552 = vmatpush.msra.mxu0 0.0
        %v553 = vand.u32 %v484, 4294901760
        %v554 = vsub.f32 %v484, %v553
        %555 = vmatpush.msra.mxu0 %v554
        %v556 = vand.u32 %v481, 4294901760
        %v557 = vsub.f32 %v481, %v556
        %558 = vmatmul.f32.gmra.mxu0 %v557
        %v559 = vpop.f32.mrf.mxu0
        %v560 = vadd.f32 %v536, %v559
        %561 = vdwg.mxu0
        %562 = vmatpush.msra.mxu0 0.0
        %563 = vmatpush.msra.mxu0 0.0
        %564 = vmatpush.msra.mxu0 0.0
        %565 = vmatpush.msra.mxu0 0.0
        %566 = vmatpush.msra.mxu0 0.0
        %567 = vmatpush.msra.mxu0 0.0
        %568 = vmatpush.msra.mxu0 0.0
        %569 = vmatpush.msra.mxu0 0.0
        %570 = vmatpush.msra.mxu0 0.0
        %571 = vmatpush.msra.mxu0 0.0
        %572 = vmatpush.msra.mxu0 0.0
        %573 = vmatpush.msra.mxu0 0.0
        %574 = vmatpush.msra.mxu0 0.0
        %575 = vmatpush.msra.mxu0 0.0
        %576 = vmatpush.msra.mxu0 0.0
        %v577 = vand.u32 %v484, 4294901760
        %578 = vmatpush.msra.mxu0 %v577
        %v579 = vand.u32 %v481, 4294901760
        %v580 = vsub.f32 %v481, %v579
        %v581 = vand.u32 %v580, 4294901760
        %582 = vmatmul.f32.gmra.mxu0 %v581
        %v583 = vpop.f32.mrf.mxu0
        %v584 = vadd.f32 %v560, %v583
        %585 = vdwg.mxu0
        %586 = vmatpush.msra.mxu0 0.0
        %587 = vmatpush.msra.mxu0 0.0
        %588 = vmatpush.msra.mxu0 0.0
        %589 = vmatpush.msra.mxu0 0.0
        %590 = vmatpush.msra.mxu0 0.0
        %591 = vmatpush.msra.mxu0 0.0
        %592 = vmatpush.msra.mxu0 0.0
        %593 = vmatpush.msra.mxu0 0.0
        %594 = vmatpush.msra.mxu0 0.0
        %595 = vmatpush.msra.mxu0 0.0
        %596 = vmatpush.msra.mxu0 0.0
        %597 = vmatpush.msra.mxu0 0.0
        %598 = vmatpush.msra.mxu0 0.0
        %599 = vmatpush.msra.mxu0 0.0
        %600 = vmatpush.msra.mxu0 0.0
        %v601 = vand.u32 %v484, 4294901760
        %v602 = vsub.f32 %v484, %v601
        %v603 = vand.u32 %v602, 4294901760
        %604 = vmatpush.msra.mxu0 %v603
        %v605 = vand.u32 %v481, 4294901760
        %606 = vmatmul.f32.gmra.mxu0 %v605
        %v607 = vpop.f32.mrf.mxu0
        %v608 = vadd.f32 %v584, %v607
        %609 = vdwg.mxu0
        %610 = vmatpush.msra.mxu0 0.0
        %611 = vmatpush.msra.mxu0 0.0
        %612 = vmatpush.msra.mxu0 0.0
        %613 = vmatpush.msra.mxu0 0.0
        %614 = vmatpush.msra.mxu0 0.0
        %615 = vmatpush.msra.mxu0 0.0
        %616 = vmatpush.msra.mxu0 0.0
        %617 = vmatpush.msra.mxu0 0.0
        %618 = vmatpush.msra.mxu0 0.0
        %619 = vmatpush.msra.mxu0 0.0
        %620 = vmatpush.msra.mxu0 0.0
        %621 = vmatpush.msra.mxu0 0.0
        %622 = vmatpush.msra.mxu0 0.0
        %623 = vmatpush.msra.mxu0 0.0
        %624 = vmatpush.msra.mxu0 0.0
        %v625 = vand.u32 %v484, 4294901760
        %626 = vmatpush.msra.mxu0 %v625
        %v627 = vand.u32 %v481, 4294901760
        %628 = vmatmul.f32.gmra.mxu0 %v627
        %v629 = vpop.f32.mrf.mxu0
        %v630 = vadd.f32 %v608, %v629
        %631 = vdwg.mxu0
        %v633 = vsel %vm479, %v473, 0
        %v635 = vsel %vm483, %v472, 0
        %637 = vmatpush.msra.mxu0 0.0
        %638 = vmatpush.msra.mxu0 0.0
        %639 = vmatpush.msra.mxu0 0.0
        %640 = vmatpush.msra.mxu0 0.0
        %641 = vmatpush.msra.mxu0 0.0
        %642 = vmatpush.msra.mxu0 0.0
        %643 = vmatpush.msra.mxu0 0.0
        %644 = vmatpush.msra.mxu0 0.0
        %645 = vmatpush.msra.mxu0 0.0
        %646 = vmatpush.msra.mxu0 0.0
        %647 = vmatpush.msra.mxu0 0.0
        %648 = vmatpush.msra.mxu0 0.0
        %649 = vmatpush.msra.mxu0 0.0
        %650 = vmatpush.msra.mxu0 0.0
        %651 = vmatpush.msra.mxu0 0.0
        %v652 = vand.u32 %v635, 4294901760
        %653 = vmatpush.msra.mxu0 %v652
        %v654 = vand.u32 %v633, 4294901760
        %v655 = vsub.f32 %v633, %v654
        %v656 = vand.u32 %v655, 4294901760
        %v657 = vsub.f32 %v655, %v656
        %v658 = vand.u32 %v657, 4294901760
        %659 = vmatmul.f32.gmra.mxu0 %v658
        %v660 = vpop.f32.mrf.mxu0
        %v661 = vadd.f32 %v630, %v660
        %662 = vdwg.mxu0
        %663 = vmatpush.msra.mxu0 0.0
        %664 = vmatpush.msra.mxu0 0.0
        %665 = vmatpush.msra.mxu0 0.0
        %666 = vmatpush.msra.mxu0 0.0
        %667 = vmatpush.msra.mxu0 0.0
        %668 = vmatpush.msra.mxu0 0.0
        %669 = vmatpush.msra.mxu0 0.0
        %670 = vmatpush.msra.mxu0 0.0
        %671 = vmatpush.msra.mxu0 0.0
        %672 = vmatpush.msra.mxu0 0.0
        %673 = vmatpush.msra.mxu0 0.0
        %674 = vmatpush.msra.mxu0 0.0
        %675 = vmatpush.msra.mxu0 0.0
        %676 = vmatpush.msra.mxu0 0.0
        %677 = vmatpush.msra.mxu0 0.0
        %v678 = vand.u32 %v635, 4294901760
        %v679 = vsub.f32 %v635, %v678
        %v680 = vand.u32 %v679, 4294901760
        %v681 = vsub.f32 %v679, %v680
        %v682 = vand.u32 %v681, 4294901760
        %683 = vmatpush.msra.mxu0 %v682
        %v684 = vand.u32 %v633, 4294901760
        %685 = vmatmul.f32.gmra.mxu0 %v684
        %v686 = vpop.f32.mrf.mxu0
        %v687 = vadd.f32 %v661, %v686
        %688 = vdwg.mxu0
        %689 = vmatpush.msra.mxu0 0.0
        %690 = vmatpush.msra.mxu0 0.0
        %691 = vmatpush.msra.mxu0 0.0
        %692 = vmatpush.msra.mxu0 0.0
        %693 = vmatpush.msra.mxu0 0.0
        %694 = vmatpush.msra.mxu0 0.0
        %695 = vmatpush.msra.mxu0 0.0
        %696 = vmatpush.msra.mxu0 0.0
        %697 = vmatpush.msra.mxu0 0.0
        %698 = vmatpush.msra.mxu0 0.0
        %699 = vmatpush.msra.mxu0 0.0
        %700 = vmatpush.msra.mxu0 0.0
        %701 = vmatpush.msra.mxu0 0.0
        %702 = vmatpush.msra.mxu0 0.0
        %703 = vmatpush.msra.mxu0 0.0
        %v704 = vand.u32 %v635, 4294901760
        %v705 = vsub.f32 %v635, %v704
        %706 = vmatpush.msra.mxu0 %v705
        %v707 = vand.u32 %v633, 4294901760
        %v708 = vsub.f32 %v633, %v707
        %709 = vmatmul.f32.gmra.mxu0 %v708
        %v710 = vpop.f32.mrf.mxu0
        %v711 = vadd.f32 %v687, %v710
        %712 = vdwg.mxu0
        %713 = vmatpush.msra.mxu0 0.0
        %714 = vmatpush.msra.mxu0 0.0
        %715 = vmatpush.msra.mxu0 0.0
        %716 = vmatpush.msra.mxu0 0.0
        %717 = vmatpush.msra.mxu0 0.0
        %718 = vmatpush.msra.mxu0 0.0
        %719 = vmatpush.msra.mxu0 0.0
        %720 = vmatpush.msra.mxu0 0.0
        %721 = vmatpush.msra.mxu0 0.0
        %722 = vmatpush.msra.mxu0 0.0
        %723 = vmatpush.msra.mxu0 0.0
        %724 = vmatpush.msra.mxu0 0.0
        %725 = vmatpush.msra.mxu0 0.0
        %726 = vmatpush.msra.mxu0 0.0
        %727 = vmatpush.msra.mxu0 0.0
        %v728 = vand.u32 %v635, 4294901760
        %729 = vmatpush.msra.mxu0 %v728
        %v730 = vand.u32 %v633, 4294901760
        %v731 = vsub.f32 %v633, %v730
        %v732 = vand.u32 %v731, 4294901760
        %733 = vmatmul.f32.gmra.mxu0 %v732
        %v734 = vpop.f32.mrf.mxu0
        %v735 = vadd.f32 %v711, %v734
        %736 = vdwg.mxu0
        %737 = vmatpush.msra.mxu0 0.0
        %738 = vmatpush.msra.mxu0 0.0
        %739 = vmatpush.msra.mxu0 0.0
        %740 = vmatpush.msra.mxu0 0.0
        %741 = vmatpush.msra.mxu0 0.0
        %742 = vmatpush.msra.mxu0 0.0
        %743 = vmatpush.msra.mxu0 0.0
        %744 = vmatpush.msra.mxu0 0.0
        %745 = vmatpush.msra.mxu0 0.0
        %746 = vmatpush.msra.mxu0 0.0
        %747 = vmatpush.msra.mxu0 0.0
        %748 = vmatpush.msra.mxu0 0.0
        %749 = vmatpush.msra.mxu0 0.0
        %750 = vmatpush.msra.mxu0 0.0
        %751 = vmatpush.msra.mxu0 0.0
        %v752 = vand.u32 %v635, 4294901760
        %v753 = vsub.f32 %v635, %v752
        %v754 = vand.u32 %v753, 4294901760
        %755 = vmatpush.msra.mxu0 %v754
        %v756 = vand.u32 %v633, 4294901760
        %757 = vmatmul.f32.gmra.mxu0 %v756
        %v758 = vpop.f32.mrf.mxu0
        %v759 = vadd.f32 %v735, %v758
        %760 = vdwg.mxu0
        %761 = vmatpush.msra.mxu0 0.0
        %762 = vmatpush.msra.mxu0 0.0
        %763 = vmatpush.msra.mxu0 0.0
        %764 = vmatpush.msra.mxu0 0.0
        %765 = vmatpush.msra.mxu0 0.0
        %766 = vmatpush.msra.mxu0 0.0
        %767 = vmatpush.msra.mxu0 0.0
        %768 = vmatpush.msra.mxu0 0.0
        %769 = vmatpush.msra.mxu0 0.0
        %770 = vmatpush.msra.mxu0 0.0
        %771 = vmatpush.msra.mxu0 0.0
        %772 = vmatpush.msra.mxu0 0.0
        %773 = vmatpush.msra.mxu0 0.0
        %774 = vmatpush.msra.mxu0 0.0
        %775 = vmatpush.msra.mxu0 0.0
        %v776 = vand.u32 %v635, 4294901760
        %777 = vmatpush.msra.mxu0 %v776
        %v778 = vand.u32 %v633, 4294901760
        %779 = vmatmul.f32.gmra.mxu0 %v778
        %v780 = vpop.f32.mrf.mxu0
        %v781 = vadd.f32 %v759, %v780
        %782 = vdwg.mxu0
        %s783 = scalar_lea.vmem [#allocation2], 8
        %v784 = vld [vmem:[%s783] sm:$0xf]
        %785 = vrot.lane.b32.xlu0 %v472, 126
        %v786 = vpop.permute.xlu0 %785
        %v788 = vsel %vm479, %v784, 0
        %v790 = vsel %vm483, %v786, 0
        %792 = vmatpush.msra.mxu0 0.0
        %793 = vmatpush.msra.mxu0 0.0
        %794 = vmatpush.msra.mxu0 0.0
        %795 = vmatpush.msra.mxu0 0.0
        %796 = vmatpush.msra.mxu0 0.0
        %797 = vmatpush.msra.mxu0 0.0
        %798 = vmatpush.msra.mxu0 0.0
        %799 = vmatpush.msra.mxu0 0.0
        %800 = vmatpush.msra.mxu0 0.0
        %801 = vmatpush.msra.mxu0 0.0
        %802 = vmatpush.msra.mxu0 0.0
        %803 = vmatpush.msra.mxu0 0.0
        %804 = vmatpush.msra.mxu0 0.0
        %805 = vmatpush.msra.mxu0 0.0
        %806 = vmatpush.msra.mxu0 0.0
        %v807 = vand.u32 %v790, 4294901760
        %808 = vmatpush.msra.mxu0 %v807
        %v809 = vand.u32 %v788, 4294901760
        %v810 = vsub.f32 %v788, %v809
        %v811 = vand.u32 %v810, 4294901760
        %v812 = vsub.f32 %v810, %v811
        %v813 = vand.u32 %v812, 4294901760
        %814 = vmatmul.f32.gmra.mxu0 %v813
        %v815 = vpop.f32.mrf.mxu0
        %v816 = vadd.f32 0.0, %v815
        %817 = vdwg.mxu0
        %818 = vmatpush.msra.mxu0 0.0
        %819 = vmatpush.msra.mxu0 0.0
        %820 = vmatpush.msra.mxu0 0.0
        %821 = vmatpush.msra.mxu0 0.0
        %822 = vmatpush.msra.mxu0 0.0
        %823 = vmatpush.msra.mxu0 0.0
        %824 = vmatpush.msra.mxu0 0.0
        %825 = vmatpush.msra.mxu0 0.0
        %826 = vmatpush.msra.mxu0 0.0
        %827 = vmatpush.msra.mxu0 0.0
        %828 = vmatpush.msra.mxu0 0.0
        %829 = vmatpush.msra.mxu0 0.0
        %830 = vmatpush.msra.mxu0 0.0
        %831 = vmatpush.msra.mxu0 0.0
        %832 = vmatpush.msra.mxu0 0.0
        %v833 = vand.u32 %v790, 4294901760
        %v834 = vsub.f32 %v790, %v833
        %v835 = vand.u32 %v834, 4294901760
        %v836 = vsub.f32 %v834, %v835
        %v837 = vand.u32 %v836, 4294901760
        %838 = vmatpush.msra.mxu0 %v837
        %v839 = vand.u32 %v788, 4294901760
        %840 = vmatmul.f32.gmra.mxu0 %v839
        %v841 = vpop.f32.mrf.mxu0
        %v842 = vadd.f32 %v816, %v841
        %843 = vdwg.mxu0
        %844 = vmatpush.msra.mxu0 0.0
        %845 = vmatpush.msra.mxu0 0.0
        %846 = vmatpush.msra.mxu0 0.0
        %847 = vmatpush.msra.mxu0 0.0
        %848 = vmatpush.msra.mxu0 0.0
        %849 = vmatpush.msra.mxu0 0.0
        %850 = vmatpush.msra.mxu0 0.0
        %851 = vmatpush.msra.mxu0 0.0
        %852 = vmatpush.msra.mxu0 0.0
        %853 = vmatpush.msra.mxu0 0.0
        %854 = vmatpush.msra.mxu0 0.0
        %855 = vmatpush.msra.mxu0 0.0
        %856 = vmatpush.msra.mxu0 0.0
        %857 = vmatpush.msra.mxu0 0.0
        %858 = vmatpush.msra.mxu0 0.0
        %v859 = vand.u32 %v790, 4294901760
        %v860 = vsub.f32 %v790, %v859
        %861 = vmatpush.msra.mxu0 %v860
        %v862 = vand.u32 %v788, 4294901760
        %v863 = vsub.f32 %v788, %v862
        %864 = vmatmul.f32.gmra.mxu0 %v863
        %v865 = vpop.f32.mrf.mxu0
        %v866 = vadd.f32 %v842, %v865
        %867 = vdwg.mxu0
        %868 = vmatpush.msra.mxu0 0.0
        %869 = vmatpush.msra.mxu0 0.0
        %870 = vmatpush.msra.mxu0 0.0
        %871 = vmatpush.msra.mxu0 0.0
        %872 = vmatpush.msra.mxu0 0.0
        %873 = vmatpush.msra.mxu0 0.0
        %874 = vmatpush.msra.mxu0 0.0
        %875 = vmatpush.msra.mxu0 0.0
        %876 = vmatpush.msra.mxu0 0.0
        %877 = vmatpush.msra.mxu0 0.0
        %878 = vmatpush.msra.mxu0 0.0
        %879 = vmatpush.msra.mxu0 0.0
        %880 = vmatpush.msra.mxu0 0.0
        %881 = vmatpush.msra.mxu0 0.0
        %882 = vmatpush.msra.mxu0 0.0
        %v883 = vand.u32 %v790, 4294901760
        %884 = vmatpush.msra.mxu0 %v883
        %v885 = vand.u32 %v788, 4294901760
        %v886 = vsub.f32 %v788, %v885
        %v887 = vand.u32 %v886, 4294901760
        %888 = vmatmul.f32.gmra.mxu0 %v887
        %v889 = vpop.f32.mrf.mxu0
        %v890 = vadd.f32 %v866, %v889
        %891 = vdwg.mxu0
        %892 = vmatpush.msra.mxu0 0.0
        %893 = vmatpush.msra.mxu0 0.0
        %894 = vmatpush.msra.mxu0 0.0
        %895 = vmatpush.msra.mxu0 0.0
        %896 = vmatpush.msra.mxu0 0.0
        %897 = vmatpush.msra.mxu0 0.0
        %898 = vmatpush.msra.mxu0 0.0
        %899 = vmatpush.msra.mxu0 0.0
        %900 = vmatpush.msra.mxu0 0.0
        %901 = vmatpush.msra.mxu0 0.0
        %902 = vmatpush.msra.mxu0 0.0
        %903 = vmatpush.msra.mxu0 0.0
        %904 = vmatpush.msra.mxu0 0.0
        %905 = vmatpush.msra.mxu0 0.0
        %906 = vmatpush.msra.mxu0 0.0
        %v907 = vand.u32 %v790, 4294901760
        %v908 = vsub.f32 %v790, %v907
        %v909 = vand.u32 %v908, 4294901760
        %910 = vmatpush.msra.mxu0 %v909
        %v911 = vand.u32 %v788, 4294901760
        %912 = vmatmul.f32.gmra.mxu0 %v911
        %v913 = vpop.f32.mrf.mxu0
        %v914 = vadd.f32 %v890, %v913
        %915 = vdwg.mxu0
        %916 = vmatpush.msra.mxu0 0.0
        %917 = vmatpush.msra.mxu0 0.0
        %918 = vmatpush.msra.mxu0 0.0
        %919 = vmatpush.msra.mxu0 0.0
        %920 = vmatpush.msra.mxu0 0.0
        %921 = vmatpush.msra.mxu0 0.0
        %922 = vmatpush.msra.mxu0 0.0
        %923 = vmatpush.msra.mxu0 0.0
        %924 = vmatpush.msra.mxu0 0.0
        %925 = vmatpush.msra.mxu0 0.0
        %926 = vmatpush.msra.mxu0 0.0
        %927 = vmatpush.msra.mxu0 0.0
        %928 = vmatpush.msra.mxu0 0.0
        %929 = vmatpush.msra.mxu0 0.0
        %930 = vmatpush.msra.mxu0 0.0
        %v931 = vand.u32 %v790, 4294901760
        %932 = vmatpush.msra.mxu0 %v931
        %v933 = vand.u32 %v788, 4294901760
        %934 = vmatmul.f32.gmra.mxu0 %v933
        %v935 = vpop.f32.mrf.mxu0
        %v936 = vadd.f32 %v914, %v935
        %937 = vdwg.mxu0
        %v938 = vadd.f32 %v781, %v936
        %v939 = vld [vmem:[%s4] sm:$0xf]
        %941 = vset.pattern.permute.xlu0 0
        %942 = vperm.xlu0 %941, %v939
        %v943 = vpop.permute.xlu0 %942
        %v945 = vadd.f32 %v938, %v943
        %v946 = vmax.f32 %v945, 0.0
        %v947 = vld [vmem:[%s5] sm:$0xff]
        %v948 = vld [vmem:[%s5 + $0x8] sm:$0xff]
        %v949 = vld [vmem:[%s6] sm:$0xff]
        %v950 = vld [vmem:[%s6 + $0x8] sm:$0xff]
        %952 = vset.pattern.permute.xlu0 0
        %953 = vperm.xlu0 %952, %v949
        %v954 = vpop.permute.xlu0 %953
        %957 = vset.pattern.permute.xlu0 0
        %958 = vperm.xlu0 %957, %v950
        %v959 = vpop.permute.xlu0 %958
        %v962 = vsel %vm479, %v947, 0
        %v965 = vsel %vm479, %v948, 0
        %v968 = vsel %vm483, %v946, 0
        %970 = vmatpush.msra.mxu0 0.0
        %971 = vmatpush.msra.mxu0 0.0
        %972 = vmatpush.msra.mxu0 0.0
        %973 = vmatpush.msra.mxu0 0.0
        %974 = vmatpush.msra.mxu0 0.0
        %975 = vmatpush.msra.mxu0 0.0
        %976 = vmatpush.msra.mxu0 0.0
        %977 = vmatpush.msra.mxu0 0.0
        %978 = vmatpush.msra.mxu0 0.0
        %979 = vmatpush.msra.mxu0 0.0
        %980 = vmatpush.msra.mxu0 0.0
        %981 = vmatpush.msra.mxu0 0.0
        %982 = vmatpush.msra.mxu0 0.0
        %983 = vmatpush.msra.mxu0 0.0
        %984 = vmatpush.msra.mxu0 0.0
        %v985 = vand.u32 %v968, 4294901760
        %986 = vmatpush.msra.mxu0 %v985
        %v987 = vand.u32 %v962, 4294901760
        %v988 = vsub.f32 %v962, %v987
        %v989 = vand.u32 %v988, 4294901760
        %v990 = vsub.f32 %v988, %v989
        %v991 = vand.u32 %v990, 4294901760
        %992 = vmatmul.f32.gmra.mxu0 %v991
        %v993 = vpop.f32.mrf.mxu0
        %v994 = vadd.f32 %v954, %v993
        %v995 = vand.u32 %v965, 4294901760
        %v996 = vsub.f32 %v965, %v995
        %v997 = vand.u32 %v996, 4294901760
        %v998 = vsub.f32 %v996, %v997
        %v999 = vand.u32 %v998, 4294901760
        %1000 = vmatmul.f32.gmra.mxu0 %v999
        %v1001 = vpop.f32.mrf.mxu0
        %v1002 = vadd.f32 %v959, %v1001
        %1003 = vdwg.mxu0
        %1004 = vmatpush.msra.mxu0 0.0
        %1005 = vmatpush.msra.mxu0 0.0
        %1006 = vmatpush.msra.mxu0 0.0
        %1007 = vmatpush.msra.mxu0 0.0
        %1008 = vmatpush.msra.mxu0 0.0
        %1009 = vmatpush.msra.mxu0 0.0
        %1010 = vmatpush.msra.mxu0 0.0
        %1011 = vmatpush.msra.mxu0 0.0
        %1012 = vmatpush.msra.mxu0 0.0
        %1013 = vmatpush.msra.mxu0 0.0
        %1014 = vmatpush.msra.mxu0 0.0
        %1015 = vmatpush.msra.mxu0 0.0
        %1016 = vmatpush.msra.mxu0 0.0
        %1017 = vmatpush.msra.mxu0 0.0
        %1018 = vmatpush.msra.mxu0 0.0
        %v1019 = vand.u32 %v968, 4294901760
        %v1020 = vsub.f32 %v968, %v1019
        %v1021 = vand.u32 %v1020, 4294901760
        %v1022 = vsub.f32 %v1020, %v1021
        %v1023 = vand.u32 %v1022, 4294901760
        %1024 = vmatpush.msra.mxu0 %v1023
        %v1025 = vand.u32 %v962, 4294901760
        %1026 = vmatmul.f32.gmra.mxu0 %v1025
        %v1027 = vpop.f32.mrf.mxu0
        %v1028 = vadd.f32 %v994, %v1027
        %v1029 = vand.u32 %v965, 4294901760
        %1030 = vmatmul.f32.gmra.mxu0 %v1029
        %v1031 = vpop.f32.mrf.mxu0
        %v1032 = vadd.f32 %v1002, %v1031
        %1033 = vdwg.mxu0
        %1034 = vmatpush.msra.mxu0 0.0
        %1035 = vmatpush.msra.mxu0 0.0
        %1036 = vmatpush.msra.mxu0 0.0
        %1037 = vmatpush.msra.mxu0 0.0
        %1038 = vmatpush.msra.mxu0 0.0
        %1039 = vmatpush.msra.mxu0 0.0
        %1040 = vmatpush.msra.mxu0 0.0
        %1041 = vmatpush.msra.mxu0 0.0
        %1042 = vmatpush.msra.mxu0 0.0
        %1043 = vmatpush.msra.mxu0 0.0
        %1044 = vmatpush.msra.mxu0 0.0
        %1045 = vmatpush.msra.mxu0 0.0
        %1046 = vmatpush.msra.mxu0 0.0
        %1047 = vmatpush.msra.mxu0 0.0
        %1048 = vmatpush.msra.mxu0 0.0
        %v1049 = vand.u32 %v968, 4294901760
        %v1050 = vsub.f32 %v968, %v1049
        %1051 = vmatpush.msra.mxu0 %v1050
        %v1052 = vand.u32 %v962, 4294901760
        %v1053 = vsub.f32 %v962, %v1052
        %1054 = vmatmul.f32.gmra.mxu0 %v1053
        %v1055 = vpop.f32.mrf.mxu0
        %v1056 = vadd.f32 %v1028, %v1055
        %v1057 = vand.u32 %v965, 4294901760
        %v1058 = vsub.f32 %v965, %v1057
        %1059 = vmatmul.f32.gmra.mxu0 %v1058
        %v1060 = vpop.f32.mrf.mxu0
        %v1061 = vadd.f32 %v1032, %v1060
        %1062 = vdwg.mxu0
        %1063 = vmatpush.msra.mxu0 0.0
        %1064 = vmatpush.msra.mxu0 0.0
        %1065 = vmatpush.msra.mxu0 0.0
        %1066 = vmatpush.msra.mxu0 0.0
        %1067 = vmatpush.msra.mxu0 0.0
        %1068 = vmatpush.msra.mxu0 0.0
        %1069 = vmatpush.msra.mxu0 0.0
        %1070 = vmatpush.msra.mxu0 0.0
        %1071 = vmatpush.msra.mxu0 0.0
        %1072 = vmatpush.msra.mxu0 0.0
        %1073 = vmatpush.msra.mxu0 0.0
        %1074 = vmatpush.msra.mxu0 0.0
        %1075 = vmatpush.msra.mxu0 0.0
        %1076 = vmatpush.msra.mxu0 0.0
        %1077 = vmatpush.msra.mxu0 0.0
        %v1078 = vand.u32 %v968, 4294901760
        %1079 = vmatpush.msra.mxu0 %v1078
        %v1080 = vand.u32 %v962, 4294901760
        %v1081 = vsub.f32 %v962, %v1080
        %v1082 = vand.u32 %v1081, 4294901760
        %1083 = vmatmul.f32.gmra.mxu0 %v1082
        %v1084 = vpop.f32.mrf.mxu0
        %v1085 = vadd.f32 %v1056, %v1084
        %v1086 = vand.u32 %v965, 4294901760
        %v1087 = vsub.f32 %v965, %v1086
        %v1088 = vand.u32 %v1087, 4294901760
        %1089 = vmatmul.f32.gmra.mxu0 %v1088
        %v1090 = vpop.f32.mrf.mxu0
        %v1091 = vadd.f32 %v1061, %v1090
        %1092 = vdwg.mxu0
        %1093 = vmatpush.msra.mxu0 0.0
        %1094 = vmatpush.msra.mxu0 0.0
        %1095 = vmatpush.msra.mxu0 0.0
        %1096 = vmatpush.msra.mxu0 0.0
        %1097 = vmatpush.msra.mxu0 0.0
        %1098 = vmatpush.msra.mxu0 0.0
        %1099 = vmatpush.msra.mxu0 0.0
        %1100 = vmatpush.msra.mxu0 0.0
        %1101 = vmatpush.msra.mxu0 0.0
        %1102 = vmatpush.msra.mxu0 0.0
        %1103 = vmatpush.msra.mxu0 0.0
        %1104 = vmatpush.msra.mxu0 0.0
        %1105 = vmatpush.msra.mxu0 0.0
        %1106 = vmatpush.msra.mxu0 0.0
        %1107 = vmatpush.msra.mxu0 0.0
        %v1108 = vand.u32 %v968, 4294901760
        %v1109 = vsub.f32 %v968, %v1108
        %v1110 = vand.u32 %v1109, 4294901760
        %1111 = vmatpush.msra.mxu0 %v1110
        %v1112 = vand.u32 %v962, 4294901760
        %1113 = vmatmul.f32.gmra.mxu0 %v1112
        %v1114 = vpop.f32.mrf.mxu0
        %v1115 = vadd.f32 %v1085, %v1114
        %v1116 = vand.u32 %v965, 4294901760
        %1117 = vmatmul.f32.gmra.mxu0 %v1116
        %v1118 = vpop.f32.mrf.mxu0
        %v1119 = vadd.f32 %v1091, %v1118
        %1120 = vdwg.mxu0
        %1121 = vmatpush.msra.mxu0 0.0
        %1122 = vmatpush.msra.mxu0 0.0
        %1123 = vmatpush.msra.mxu0 0.0
        %1124 = vmatpush.msra.mxu0 0.0
        %1125 = vmatpush.msra.mxu0 0.0
        %1126 = vmatpush.msra.mxu0 0.0
        %1127 = vmatpush.msra.mxu0 0.0
        %1128 = vmatpush.msra.mxu0 0.0
        %1129 = vmatpush.msra.mxu0 0.0
        %1130 = vmatpush.msra.mxu0 0.0
        %1131 = vmatpush.msra.mxu0 0.0
        %1132 = vmatpush.msra.mxu0 0.0
        %1133 = vmatpush.msra.mxu0 0.0
        %1134 = vmatpush.msra.mxu0 0.0
        %1135 = vmatpush.msra.mxu0 0.0
        %v1136 = vand.u32 %v968, 4294901760
        %1137 = vmatpush.msra.mxu0 %v1136
        %v1138 = vand.u32 %v962, 4294901760
        %1139 = vmatmul.f32.gmra.mxu0 %v1138
        %v1140 = vpop.f32.mrf.mxu0
        %v1141 = vadd.f32 %v1115, %v1140
        %v1142 = vand.u32 %v965, 4294901760
        %1143 = vmatmul.f32.gmra.mxu0 %v1142
        %v1144 = vpop.f32.mrf.mxu0
        %v1145 = vadd.f32 %v1119, %v1144
        %1146 = vdwg.mxu0
        %1149 = vrot.lane.b32.xlu0 %v294, 127
        %v1150 = vpop.permute.xlu0 %1149
        %1151 = vrot.lane.b32.xlu0 %v295, 127
        %v1152 = vpop.permute.xlu0 %1151
        %v1155 = vadd.f32 %v1141, %v1150
        %v1156 = vadd.f32 %v1145, %v1152
        %v1157 = vmax.f32 %v1155, 0.0
        %v1158 = vmax.f32 %v1156, 0.0
        %1159 = vst.msk [vmem:[%s288] sm:$0xff] %vm303, %v1157
        %1160 = vst.msk [vmem:[%s288 + $0x8] sm:$0xff] %vm303, %v1158
        %s1161 = sand.u32 %s182, 1
        %s1162 = scalar_lea.sflag [#allocation4], %s1161
        %s1163 = sand.u32 %s182, 1
        %s1164 = smul.addr %s1163, 16
        %s1165 = scalar_lea.vmem [#allocation5], %s1164
        // Predicated region
        $region53: #{tpu_custom_call.1} parent=47 // pred_check
          %p1166 = pneg %p192
        $region54: #{tpu_custom_call.1} parent=47 // pred_check_branch
          %1168 = sbr.rel (%p1166) target = $region56
        $region55: #{tpu_custom_call.1} parent=47 // pred_region
          %1170 = vsyncadd %s1162, 0
          %s1171 = smul.addr %s22, 2
          %s1172 = smul.addr %s1171, 8
          %s1173 = scalar_lea.hbm %s7, %s1172
          %s1174 = sshll.u32 %s1165, 4
          %s1175 = int_to_ptr.vmem [resolvable:$true] %s1174
          %s1176 = sshll.u32 %s1173, 4
          %s1177 = int_to_ptr.hbm [resolvable:$true] %s1176
          %1182 = dma.vmem_to_hbm [thread:$0]  %s1175, 256, %s1177, %s1162, 128, 128, 8
        $region56: #{tpu_custom_call.1} parent=47 // pred_fallthru
          _
      $region48: #{tpu_custom_call.1} parent=5 // pred_fallthru
        _
      %p1183 = scmp.le.s32.totalorder 2, %s17
      // Predicated region
      $region57: #{tpu_custom_call.1} parent=5 // pred_check
        %p1184 = pneg %p1183
      $region58: #{tpu_custom_call.1} parent=5 // pred_check_branch
        %1186 = sbr.rel (%p1184) target = $region60
      $region59: #{tpu_custom_call.1} parent=5 // pred_region
        %s1187 = ssub.s32 %s17, 2
        // Predicated region
        $region61: #{tpu_custom_call.1} parent=59 // pred_check
          %p1188 = pneg %p198
        $region62: #{tpu_custom_call.1} parent=59 // pred_check_branch
          %1190 = sbr.rel (%p1188) target = $region64
        $region63: #{tpu_custom_call.1} parent=59 // pred_region
          %s1191 = sand.u32 %s183, 1
          %s1192 = scalar_lea.sflag [#allocation4], %s1191
          %s1193 = sand.u32 %s183, 1
          %s1194 = smul.addr %s1193, 16
          %s1195 = scalar_lea.vmem [#allocation5], %s1194
          %1197 = dma.done %s1192, 256
        $region64: #{tpu_custom_call.1} parent=59 // pred_fallthru
          _
      $region60: #{tpu_custom_call.1} parent=5 // pred_fallthru
        _
    $region6: #{tpu_custom_call.1} parent=1 // loop_footer
      %s21 = sadd.s32 1, %s17
    $region7: #{tpu_custom_call.1} parent=1 // loop_footer_branch
      %16 = sbr.rel target = $region3
    $region8: #{tpu_custom_call.1} parent=1 // loop_exit
      _
    %1198 = vsyncpa [#allocation3], 1
    %s1199 = scalar_lea.sflag [#allocation3], 1
    %1200 = vsyncpa %s1199, 1
    %1201 = vsyncpa [#allocation4], 1
    %s1202 = scalar_lea.sflag [#allocation4], 1
    %1203 = vsyncpa %s1202, 1

</llo_original>
